<compile_context>
chip_gen: v7x
topology: tpu7x:2x2x1
jax: 0.10.0
libtpu: 0.0.40
codegen_flags: <defaults>
</compile_context>

<pallas_src>
import functools

import jax
import jax.numpy as jnp
from jax import lax
from jax.experimental import pallas as pl
from jax.experimental.pallas import tpu as pltpu


def _twhin_loss_kernel(n1_ref, n2_ref, loss_ref, reg_ref, loss_acc, l2_acc,
                       *, neg_weight, reg_weight, batch_size, dim):
    i = pl.program_id(0)
    j = pl.program_id(1)
    ni = pl.num_programs(0)
    nj = pl.num_programs(1)

    @pl.when((i == 0) & (j == 0))
    def _init():
        loss_acc[...] = jnp.zeros_like(loss_acc)
        l2_acc[...] = jnp.zeros_like(l2_acc)

    n1 = n1_ref[...]          # (t, D) native dtype -> straight to MXU
    n2 = n2_ref[...]          # (t, D)

    # Pairwise logits for this tile: contract the lane dim D of both operands
    # (equivalent to n1 @ n2.T, without an explicit transpose / relayout).
    z = lax.dot_general(
        n1, n2,
        dimension_numbers=(((1,), (1,)), ((), ())),
        preferred_element_type=jnp.float32,
    )  # (t, t) f32

    # Numerically stable softplus(z) = max(z, 0) + log1p(exp(-|z|)).
    # TODO(synk): on v6e/v7x the EUP supports bf16; computing softplus in bf16
    # roughly doubles transcendental throughput if the loss tolerance allows.
    sp = jnp.maximum(z, 0.0) + jnp.log1p(jnp.exp(-jnp.abs(z)))

    # Off-diagonal contribution for every element of the tile.
    loss_acc[...] += neg_weight * jnp.sum(sp)

    # Diagonal correction only on tiles that intersect the global diagonal.
    @pl.when(i == j)
    def _diag():
        row = lax.broadcasted_iota(jnp.int32, z.shape, 0)
        col = lax.broadcasted_iota(jnp.int32, z.shape, 1)
        is_diag = row == col
        corr = jnp.where(is_diag, (1.0 - neg_weight) * sp - z, 0.0)
        loss_acc[...] += jnp.sum(corr)

    # Fused L2: each node1 row tile counted once (j == 0), each node2 column
    # tile counted once (i == 0); avoids a second pass over the inputs.
    @pl.when(j == 0)
    def _l2_n1():
        n1f = n1.astype(jnp.float32)
        l2_acc[...] += jnp.sum(n1f * n1f)

    @pl.when(i == 0)
    def _l2_n2():
        n2f = n2.astype(jnp.float32)
        l2_acc[...] += jnp.sum(n2f * n2f)

    # Epilogue: write the two scalar outputs exactly once, at the last step.
    @pl.when((i == ni - 1) & (j == nj - 1))
    def _finalize():
        loss_ref[...] = loss_acc[...] * (0.5 / batch_size)
        reg_ref[...] = l2_acc[...] * (reg_weight / (batch_size * dim))


def _pick_block(b):
    """Largest MXU-friendly tile that divides B (256-aligned preferred on
    v6e/v7x, 128 on v5e); falls back to the full batch for tiny/odd B."""
    for t in (512, 256, 128, 64, 32, 16, 8):
        if b % t == 0:
            return t
    return b


def twhin_loss(node1, node2, reg_weight, *, block_b=None):
    """Pallas implementation of TwhinLoss.forward. Returns (loss, reg) scalars."""
    B, D = node1.shape
    if B < 2:
        raise ValueError("TwhinLoss needs batch_size >= 2 (neg_weight = B/(B*B-B)).")
    neg_weight = float(B) / float(B * B - B)

    bb = _pick_block(B) if block_b is None else block_b
    assert B % bb == 0, "block_b must divide the batch size"
    grid = (B // bb, B // bb)

    kernel = functools.partial(
        _twhin_loss_kernel,
        neg_weight=neg_weight,
        reg_weight=float(reg_weight),
        batch_size=B,
        dim=D,
    )

    loss, reg = pl.pallas_call(
        kernel,
        out_shape=(
            jax.ShapeDtypeStruct((1, 1), jnp.float32),
            jax.ShapeDtypeStruct((1, 1), jnp.float32),
        ),
        grid_spec=pltpu.PrefetchScalarGridSpec(
            num_scalar_prefetch=0,
            grid=grid,
            in_specs=[
                pl.BlockSpec((bb, D), lambda i, j: (i, 0)),   # node1 row tile
                pl.BlockSpec((bb, D), lambda i, j: (j, 0)),   # node2 col tile
            ],
            out_specs=(
                pl.BlockSpec((1, 1), lambda i, j: (0, 0)),
                pl.BlockSpec((1, 1), lambda i, j: (0, 0)),
            ),
            scratch_shapes=[
                pltpu.VMEM((1, 1), jnp.float32),  # loss accumulator
                pltpu.VMEM((1, 1), jnp.float32),  # l2 accumulator
            ],
        ),
        compiler_params=pltpu.CompilerParams(
            # Both grid axes reduce into shared scalar accumulators.
            dimension_semantics=("arbitrary", "arbitrary"),
        ),
    )(node1, node2)
    return loss[0, 0], reg[0, 0]


def twhin_loss_ref(node1, node2, reg_weight):
    """Pure-JAX reference mirroring the PyTorch code (for correctness check)."""
    B = node1.shape[0]
    num_negatives = B * B - B
    neg_weight = float(B) / float(num_negatives)
    dp = node1 @ node2.T
    pos = jnp.diag(dp)
    neg = dp.flatten()[1:].reshape(B - 1, B + 1)[:, :-1].flatten()
    logits = jnp.concatenate([pos, neg])
    labels = jnp.concatenate([jnp.ones((B,)), jnp.zeros((num_negatives,))])
    weights = jnp.concatenate(
        [jnp.ones((B,)), jnp.full((num_negatives,), neg_weight)]
    )
    bce = jnp.maximum(logits, 0.0) - logits * labels + jnp.log1p(
        jnp.exp(-jnp.abs(logits))
    )
    loss = jnp.sum(weights * bce) / 2.0 / B
    reg = reg_weight * (jnp.mean(node1 * node1) + jnp.mean(node2 * node2))
    return loss, reg


if __name__ == "__main__":
    reg_weight = 0.01
    key = jax.random.PRNGKey(0)

    # Test 1: small single-tile case (grid 1x1).
    B, D = 8, 32
    k1, k2, key = jax.random.split(key, 3)
    node1 = jax.random.normal(k1, (B, D), dtype=jnp.float32)
    node2 = jax.random.normal(k2, (B, D), dtype=jnp.float32)
    loss, reg = twhin_loss(node1, node2, reg_weight)
    jax.block_until_ready((loss, reg))
    ref_loss, ref_reg = twhin_loss_ref(node1, node2, reg_weight)
    assert jnp.allclose(loss, ref_loss, rtol=1e-4, atol=1e-4), (loss, ref_loss)
    assert jnp.allclose(reg, ref_reg, rtol=1e-4, atol=1e-4), (reg, ref_reg)

    # Test 2: multi-tile case (B=24 -> 8x8 tiles, 3x3 grid) to exercise the
    # off-diagonal tiles, the diagonal correction and the fused L2 gating.
    B, D = 24, 128
    k1, k2, key = jax.random.split(key, 3)
    node1 = jax.random.normal(k1, (B, D), dtype=jnp.float32)
    node2 = jax.random.normal(k2, (B, D), dtype=jnp.float32)
    loss, reg = twhin_loss(node1, node2, reg_weight)
    jax.block_until_ready((loss, reg))
    ref_loss, ref_reg = twhin_loss_ref(node1, node2, reg_weight)
    assert jnp.allclose(loss, ref_loss, rtol=1e-4, atol=1e-4), (loss, ref_loss)
    assert jnp.allclose(reg, ref_reg, rtol=1e-4, atol=1e-4), (reg, ref_reg)

    print("KERNEL_OK")
</pallas_src>

<mosaic_0001>
module attributes {stable_mosaic.version = 11 : i64} {
  func.func @_twhin_loss_kernel(%arg0: i32, %arg1: i32, %arg2: memref<8x32xf32, #tpu.memory_space<vmem>>, %arg3: memref<8x32xf32, #tpu.memory_space<vmem>>, %arg4: memref<1x1xf32, #tpu.memory_space<vmem>>, %arg5: memref<1x1xf32, #tpu.memory_space<vmem>>, %arg6: memref<1x1xf32, #tpu.memory_space<vmem>>, %arg7: memref<1x1xf32, #tpu.memory_space<vmem>>) attributes {dimension_semantics = [#tpu.dimension_semantics<arbitrary>, #tpu.dimension_semantics<arbitrary>], iteration_bounds = array<i64: 1, 1>, scalar_prefetch = 0 : i64, scratch_operands = 2 : i64, tpu.core_type = #tpu.core_type<tc>, window_params = [{transform_indices = @transform_0, window_bounds = array<i64: 8, 32>}, {transform_indices = @transform_1, window_bounds = array<i64: 8, 32>}, {pipeline_mode = #tpu.pipeline_mode<synchronous>, transform_indices = @transform_2, window_bounds = array<i64: 1, 1>}, {pipeline_mode = #tpu.pipeline_mode<synchronous>, transform_indices = @transform_3, window_bounds = array<i64: 1, 1>}]} {
    %c0_i32 = arith.constant 0 : i32
    %0 = arith.cmpi eq, %arg0, %c0_i32 : i32
    %c0_i32_0 = arith.constant 0 : i32
    %1 = arith.cmpi eq, %arg1, %c0_i32_0 : i32
    %2 = arith.andi %0, %1 : i1
    %3 = arith.extui %2 : i1 to i32
    %c0_i32_1 = arith.constant 0 : i32
    %4 = arith.cmpi ne, %3, %c0_i32_1 : i32
    scf.if %4 {
      %cst_21 = arith.constant 0.000000e+00 : f32
      %39 = vector.broadcast %cst_21 : f32 to vector<1x1xf32>
      %c0_22 = arith.constant 0 : index
      %c0_23 = arith.constant 0 : index
      %40 = vector.load %arg6[%c0_22, %c0_23] : memref<1x1xf32, #tpu.memory_space<vmem>>, vector<1x1xf32>
      tpu.vector_store %arg6[%c0_22, %c0_23], %39 {strides = array<i32>} : memref<1x1xf32, #tpu.memory_space<vmem>>, vector<1x1xf32>,
      %cst_24 = arith.constant 0.000000e+00 : f32
      %41 = vector.broadcast %cst_24 : f32 to vector<1x1xf32>
      %c0_25 = arith.constant 0 : index
      %c0_26 = arith.constant 0 : index
      %42 = vector.load %arg7[%c0_25, %c0_26] : memref<1x1xf32, #tpu.memory_space<vmem>>, vector<1x1xf32>
      tpu.vector_store %arg7[%c0_25, %c0_26], %41 {strides = array<i32>} : memref<1x1xf32, #tpu.memory_space<vmem>>, vector<1x1xf32>,
    } else {
    }
    %c0 = arith.constant 0 : index
    %c0_2 = arith.constant 0 : index
    %5 = vector.load %arg2[%c0, %c0_2] : memref<8x32xf32, #tpu.memory_space<vmem>>, vector<8x32xf32>
    %c0_3 = arith.constant 0 : index
    %c0_4 = arith.constant 0 : index
    %6 = vector.load %arg3[%c0_3, %c0_4] : memref<8x32xf32, #tpu.memory_space<vmem>>, vector<8x32xf32>
    %cst = arith.constant dense<0.000000e+00> : vector<8x8xf32>
    %7 = tpu.matmul %5, %6, %cst {dimension_numbers = #tpu.dot_dimension_numbers<[1], [1], [0], [0], [0, 0, 1, 0], [], []>} : vector<8x32xf32>, vector<8x32xf32>, vector<8x8xf32> -> vector<8x8xf32>
    %cst_5 = arith.constant 0.000000e+00 : f32
    %8 = vector.broadcast %cst_5 : f32 to vector<8x8xf32>
    %9 = arith.maximumf %7, %8 : vector<8x8xf32>
    %10 = math.absf %7 : vector<8x8xf32>
    %cst_6 = arith.constant 0.000000e+00 : f32
    %11 = vector.broadcast %cst_6 : f32 to vector<8x8xf32>
    %12 = arith.subf %11, %10 : vector<8x8xf32>
    %13 = math.exp %12 : vector<8x8xf32>
    %14 = math.log1p %13 : vector<8x8xf32>
    %15 = arith.addf %9, %14 : vector<8x8xf32>
    %c0_7 = arith.constant 0 : index
    %c0_8 = arith.constant 0 : index
    %16 = vector.load %arg6[%c0_7, %c0_8] : memref<1x1xf32, #tpu.memory_space<vmem>>, vector<1x1xf32>
    %17 = vector.shape_cast %15 : vector<8x8xf32> to vector<1x8x8xf32>
    %cst_9 = arith.constant dense<0.000000e+00> : vector<1xf32>
    %18 = vector.multi_reduction <add>, %17, %cst_9 [1, 2] : vector<1x8x8xf32> to vector<1xf32>
    %19 = vector.shape_cast %18 : vector<1xf32> to vector<1x1x1xf32>
    %20 = vector.extract %19[0, 0, 0] : f32 from vector<1x1x1xf32>
    %cst_10 = arith.constant 0.142857149 : f32
    %21 = arith.mulf %cst_10, %20 : f32
    %22 = vector.broadcast %21 : f32 to vector<1x1xf32>
    %23 = arith.addf %16, %22 : vector<1x1xf32>
    %c0_11 = arith.constant 0 : index
    %c0_12 = arith.constant 0 : index
    %24 = vector.load %arg6[%c0_11, %c0_12] : memref<1x1xf32, #tpu.memory_space<vmem>>, vector<1x1xf32>
    tpu.vector_store %arg6[%c0_11, %c0_12], %23 {strides = array<i32>} : memref<1x1xf32, #tpu.memory_space<vmem>>, vector<1x1xf32>,
    %25 = arith.cmpi eq, %arg0, %arg1 : i32
    %26 = arith.extui %25 : i1 to i32
    %c0_i32_13 = arith.constant 0 : i32
    %27 = arith.cmpi ne, %26, %c0_i32_13 : i32
    scf.if %27 {
      %39 = tpu.iota {dimensions = array<i32: 0>} : vector<8x8xi32>
      %40 = tpu.iota {dimensions = array<i32: 1>} : vector<8x8xi32>
      %41 = arith.cmpi eq, %39, %40 : vector<8x8xi32>
      %cst_21 = arith.constant 0.857142865 : f32
      %42 = vector.broadcast %cst_21 : f32 to vector<8x8xf32>
      %43 = arith.mulf %42, %15 : vector<8x8xf32>
      %44 = arith.subf %43, %7 : vector<8x8xf32>
      %cst_22 = arith.constant 0.000000e+00 : f32
      %45 = vector.broadcast %cst_22 : f32 to vector<8x8xf32>
      %46 = arith.select %41, %44, %45 : vector<8x8xi1>, vector<8x8xf32>
      %c0_23 = arith.constant 0 : index
      %c0_24 = arith.constant 0 : index
      %47 = vector.load %arg6[%c0_23, %c0_24] : memref<1x1xf32, #tpu.memory_space<vmem>>, vector<1x1xf32>
      %48 = vector.shape_cast %46 : vector<8x8xf32> to vector<1x8x8xf32>
      %cst_25 = arith.constant dense<0.000000e+00> : vector<1xf32>
      %49 = vector.multi_reduction <add>, %48, %cst_25 [1, 2] : vector<1x8x8xf32> to vector<1xf32>
      %50 = vector.shape_cast %49 : vector<1xf32> to vector<1x1x1xf32>
      %51 = vector.extract %50[0, 0, 0] : f32 from vector<1x1x1xf32>
      %52 = vector.broadcast %51 : f32 to vector<1x1xf32>
      %53 = arith.addf %47, %52 : vector<1x1xf32>
      %c0_26 = arith.constant 0 : index
      %c0_27 = arith.constant 0 : index
      %54 = vector.load %arg6[%c0_26, %c0_27] : memref<1x1xf32, #tpu.memory_space<vmem>>, vector<1x1xf32>
      tpu.vector_store %arg6[%c0_26, %c0_27], %53 {strides = array<i32>} : memref<1x1xf32, #tpu.memory_space<vmem>>, vector<1x1xf32>,
    } else {
    }
    %c0_i32_14 = arith.constant 0 : i32
    %28 = arith.cmpi eq, %arg1, %c0_i32_14 : i32
    %29 = arith.extui %28 : i1 to i32
    %c0_i32_15 = arith.constant 0 : i32
    %30 = arith.cmpi ne, %29, %c0_i32_15 : i32
    scf.if %30 {
      %c0_21 = arith.constant 0 : index
      %c0_22 = arith.constant 0 : index
      %39 = vector.load %arg7[%c0_21, %c0_22] : memref<1x1xf32, #tpu.memory_space<vmem>>, vector<1x1xf32>
      %40 = arith.mulf %5, %5 : vector<8x32xf32>
      %41 = vector.shape_cast %40 : vector<8x32xf32> to vector<1x8x32xf32>
      %cst_23 = arith.constant dense<0.000000e+00> : vector<1xf32>
      %42 = vector.multi_reduction <add>, %41, %cst_23 [1, 2] : vector<1x8x32xf32> to vector<1xf32>
      %43 = vector.shape_cast %42 : vector<1xf32> to vector<1x1x1xf32>
      %44 = vector.extract %43[0, 0, 0] : f32 from vector<1x1x1xf32>
      %45 = vector.broadcast %44 : f32 to vector<1x1xf32>
      %46 = arith.addf %39, %45 : vector<1x1xf32>
      %c0_24 = arith.constant 0 : index
      %c0_25 = arith.constant 0 : index
      %47 = vector.load %arg7[%c0_24, %c0_25] : memref<1x1xf32, #tpu.memory_space<vmem>>, vector<1x1xf32>
      tpu.vector_store %arg7[%c0_24, %c0_25], %46 {strides = array<i32>} : memref<1x1xf32, #tpu.memory_space<vmem>>, vector<1x1xf32>,
    } else {
    }
    %c0_i32_16 = arith.constant 0 : i32
    %31 = arith.cmpi eq, %arg0, %c0_i32_16 : i32
    %32 = arith.extui %31 : i1 to i32
    %c0_i32_17 = arith.constant 0 : i32
    %33 = arith.cmpi ne, %32, %c0_i32_17 : i32
    scf.if %33 {
      %c0_21 = arith.constant 0 : index
      %c0_22 = arith.constant 0 : index
      %39 = vector.load %arg7[%c0_21, %c0_22] : memref<1x1xf32, #tpu.memory_space<vmem>>, vector<1x1xf32>
      %40 = arith.mulf %6, %6 : vector<8x32xf32>
      %41 = vector.shape_cast %40 : vector<8x32xf32> to vector<1x8x32xf32>
      %cst_23 = arith.constant dense<0.000000e+00> : vector<1xf32>
      %42 = vector.multi_reduction <add>, %41, %cst_23 [1, 2] : vector<1x8x32xf32> to vector<1xf32>
      %43 = vector.shape_cast %42 : vector<1xf32> to vector<1x1x1xf32>
      %44 = vector.extract %43[0, 0, 0] : f32 from vector<1x1x1xf32>
      %45 = vector.broadcast %44 : f32 to vector<1x1xf32>
      %46 = arith.addf %39, %45 : vector<1x1xf32>
      %c0_24 = arith.constant 0 : index
      %c0_25 = arith.constant 0 : index
      %47 = vector.load %arg7[%c0_24, %c0_25] : memref<1x1xf32, #tpu.memory_space<vmem>>, vector<1x1xf32>
      tpu.vector_store %arg7[%c0_24, %c0_25], %46 {strides = array<i32>} : memref<1x1xf32, #tpu.memory_space<vmem>>, vector<1x1xf32>,
    } else {
    }
    %c0_i32_18 = arith.constant 0 : i32
    %34 = arith.cmpi eq, %arg0, %c0_i32_18 : i32
    %c0_i32_19 = arith.constant 0 : i32
    %35 = arith.cmpi eq, %arg1, %c0_i32_19 : i32
    %36 = arith.andi %34, %35 : i1
    %37 = arith.extui %36 : i1 to i32
    %c0_i32_20 = arith.constant 0 : i32
    %38 = arith.cmpi ne, %37, %c0_i32_20 : i32
    scf.if %38 {
      %c0_21 = arith.constant 0 : index
      %c0_22 = arith.constant 0 : index
      %39 = vector.load %arg6[%c0_21, %c0_22] : memref<1x1xf32, #tpu.memory_space<vmem>>, vector<1x1xf32>
      %cst_23 = arith.constant 6.250000e-02 : f32
      %40 = vector.broadcast %cst_23 : f32 to vector<1x1xf32>
      %41 = arith.mulf %39, %40 : vector<1x1xf32>
      %c0_24 = arith.constant 0 : index
      %c0_25 = arith.constant 0 : index
      %42 = vector.load %arg4[%c0_24, %c0_25] : memref<1x1xf32, #tpu.memory_space<vmem>>, vector<1x1xf32>
      tpu.vector_store %arg4[%c0_24, %c0_25], %41 {strides = array<i32>} : memref<1x1xf32, #tpu.memory_space<vmem>>, vector<1x1xf32>,
      %c0_26 = arith.constant 0 : index
      %c0_27 = arith.constant 0 : index
      %43 = vector.load %arg7[%c0_26, %c0_27] : memref<1x1xf32, #tpu.memory_space<vmem>>, vector<1x1xf32>
      %cst_28 = arith.constant 3.906250e-05 : f32
      %44 = vector.broadcast %cst_28 : f32 to vector<1x1xf32>
      %45 = arith.mulf %43, %44 : vector<1x1xf32>
      %c0_29 = arith.constant 0 : index
      %c0_30 = arith.constant 0 : index
      %46 = vector.load %arg5[%c0_29, %c0_30] : memref<1x1xf32, #tpu.memory_space<vmem>>, vector<1x1xf32>
      tpu.vector_store %arg5[%c0_29, %c0_30], %45 {strides = array<i32>} : memref<1x1xf32, #tpu.memory_space<vmem>>, vector<1x1xf32>,
    } else {
    }
    return
  }
  func.func @transform_0(%arg0: i32, %arg1: i32) -> (i32, i32) {
    %c0_i32 = arith.constant 0 : i32
    %c0_i32_0 = arith.constant 0 : i32
    return %arg0, %c0_i32 : i32, i32
  }
  func.func @transform_1(%arg0: i32, %arg1: i32) -> (i32, i32) {
    %c0_i32 = arith.constant 0 : i32
    %c0_i32_0 = arith.constant 0 : i32
    return %arg1, %c0_i32 : i32, i32
  }
  func.func @transform_2(%arg0: i32, %arg1: i32) -> (i32, i32) {
    %c0_i32 = arith.constant 0 : i32
    %c0_i32_0 = arith.constant 0 : i32
    %c0_i32_1 = arith.constant 0 : i32
    return %c0_i32, %c0_i32_0 : i32, i32
  }
  func.func @transform_3(%arg0: i32, %arg1: i32) -> (i32, i32) {
    %c0_i32 = arith.constant 0 : i32
    %c0_i32_0 = arith.constant 0 : i32
    %c0_i32_1 = arith.constant 0 : i32
    return %c0_i32, %c0_i32_0 : i32, i32
  }
}

</mosaic_0001>

<llo_original>
// kernel: tpu_custom_call.1
$region0: #{tpu_custom_call.1}
  #allocation0 [shape = 'u32[]', space=smem, size = 0x4, offset = 0x4, fixed_abs, tag = 'smem constant byte address 0x4 - core index']
  #allocation1 [shape = 'u32[144,128]{1,0:T(1,128)}', space=vmem, size = 0x12000, scoped, tag = 'internal scratch']
  #allocation2 [shape = 'f32[1,1]{1,0:T(1,128)}', space=vmem, size = 0x200, scoped, tag = 'scratch operand']
  #allocation3 [shape = 'f32[1,1]{1,0:T(1,128)}', space=vmem, size = 0x200, scoped, tag = 'scratch operand']
  %s0 = inlined_call_operand.hbm [shape: f32[8,32], index: 0, kind: input, shape index: {}]
  %s1 = inlined_call_operand.hbm [shape: f32[8,32], index: 1, kind: input, shape index: {}]
  %s2 = inlined_call_operand.hbm [shape: f32[1,1], index: 2, kind: output, shape index: {0}]
  %s3 = inlined_call_operand.hbm [shape: f32[1,1], index: 3, kind: output, shape index: {1}]
  %4 = xla_tuple %s2, %s3
  %s5 = sld [smem:[#allocation0]]
  $region54: #{tpu_custom_call.1} parent=0
    _
  %s7 = ssub.s32 1, %s5
  %s8 = scalar_select 0, %s7, %s5
  $region1: #{tpu_custom_call.1} parent=0
    #allocation4 [shape = 'u8[4096]{0}', space=vmem, size = 0x1000, scoped, tag = 'input window, operand 0, single buffered']
    #allocation5 [shape = 's32[1]{0}', space=sflag, size = 0x4, scoped, tag = 'scoped memory for tpu_custom_call.1']
    #allocation6 [shape = 's32[1]{0}', space=sflag, size = 0x4, scoped, tag = 'scoped memory for tpu_custom_call.1']
    #allocation7 [shape = 'u8[4096]{0}', space=vmem, size = 0x1000, scoped, tag = 'input window, operand 1, single buffered']
    #allocation8 [shape = 's32[1]{0}', space=sflag, size = 0x4, scoped, tag = 'scoped memory for tpu_custom_call.1']
    #allocation9 [shape = 'u8[512]{0}', space=vmem, size = 0x400, scoped, tag = 'output window, operand 0, single buffered']
    #allocation10 [shape = 'u8[512]{0}', space=vmem, size = 0x400, scoped, tag = 'output window, operand 1, single buffered']
    #allocation11 [shape = 's32[1]{0}', space=sflag, size = 0x4, scoped, tag = 'scoped memory for tpu_custom_call.1']
    %9 = vsyncpa [#allocation5], 0
    %10 = vsyncpa [#allocation8], 0
    %11 = vsyncpa [#allocation6], 0
    %12 = vsyncpa [#allocation11], 0
    // Predicated region
    $region2: #{tpu_custom_call.1} parent=1 // pred_check
      _
    $region3: #{tpu_custom_call.1} parent=1 // pred_check_branch
      %14 = sbr.rel (0) target = $region5
    $region4: #{tpu_custom_call.1} parent=1 // pred_region
      %s16 = ssub.s32 128, 128
      %17 = vsyncadd [#allocation5], %s16
      %s19 = sshll.u32 [#allocation4], 4
      %s20 = int_to_ptr.vmem [resolvable:$true] %s19
      %22 = dma.hbm_to_vmem [thread:$0]  %s0, 128, %s20, [#allocation5]
    $region5: #{tpu_custom_call.1} parent=1 // pred_fallthru
      _
    // Predicated region
    $region6: #{tpu_custom_call.1} parent=1 // pred_check
      _
    $region7: #{tpu_custom_call.1} parent=1 // pred_check_branch
      %24 = sbr.rel (0) target = $region9
    $region8: #{tpu_custom_call.1} parent=1 // pred_region
      %s26 = ssub.s32 128, 128
      %27 = vsyncadd [#allocation8], %s26
      %s29 = sshll.u32 [#allocation7], 4
      %s30 = int_to_ptr.vmem [resolvable:$true] %s29
      %32 = dma.hbm_to_vmem [thread:$0]  %s1, 128, %s30, [#allocation8]
    $region9: #{tpu_custom_call.1} parent=1 // pred_fallthru
      _
    // Predicated region
    $region10: #{tpu_custom_call.1} parent=1 // pred_check
      _
    $region11: #{tpu_custom_call.1} parent=1 // pred_check_branch
      %34 = sbr.rel (0) target = $region13
    $region12: #{tpu_custom_call.1} parent=1 // pred_region
      %35 = dma.done [#allocation5], 128
    $region13: #{tpu_custom_call.1} parent=1 // pred_fallthru
      _
    // Predicated region
    $region14: #{tpu_custom_call.1} parent=1 // pred_check
      _
    $region15: #{tpu_custom_call.1} parent=1 // pred_check_branch
      %37 = sbr.rel (0) target = $region17
    $region16: #{tpu_custom_call.1} parent=1 // pred_region
      %38 = dma.done [#allocation8], 128
    $region17: #{tpu_custom_call.1} parent=1 // pred_fallthru
      _
    %p39 = scmp.eq.s32.totalorder 0, 0
    %p40 = scmp.eq.s32.totalorder 0, 0
    %p41 = pnand %p39, %p40
    %p42 = pneg %p41
    // Predicated region
    $region18: #{tpu_custom_call.1} parent=1 // pred_check
      _
    $region19: #{tpu_custom_call.1} parent=1 // pred_check_branch
      %44 = sbr.rel (%p41) target = $region21
    $region20: #{tpu_custom_call.1} parent=1 // pred_region
      %vm45 = vcmask 0
      %46 = vst.msk [vmem:[#allocation2] sm:$0x1] %vm45, 0.0
      %47 = vst.msk [vmem:[#allocation3] sm:$0x1] %vm45, 0.0
    $region21: #{tpu_custom_call.1} parent=1 // pred_fallthru
      _
    %v48 = vld [vmem:[#allocation4] sm:$0xff]
    %v49 = vld [vmem:[#allocation7] sm:$0xff]
    %vm50 = vcmask 261120
    %v52 = vsel %vm50, %v48, 0
    %v55 = vsel %vm50, %v49, 0
    %57 = vmatprep.subr.mxu0 0.0
    %58 = vmatpush1.xpose.msra.mxu0 %v55
    %59 = vmatprep.subr.mxu0 0.0
    %60 = vmatpush1.xpose.msra.mxu0 0.0
    %61 = vmatprep.subr.mxu0 0.0
    %62 = vmatpush1.xpose.msra.mxu0 0.0
    %63 = vmatprep.subr.mxu0 0.0
    %64 = vmatpush1.xpose.msra.mxu0 0.0
    %65 = vmatprep.subr.mxu0 0.0
    %66 = vmatpush1.xpose.msra.mxu0 0.0
    %67 = vmatprep.subr.mxu0 0.0
    %68 = vmatpush1.xpose.msra.mxu0 0.0
    %69 = vmatprep.subr.mxu0 0.0
    %70 = vmatpush1.xpose.msra.mxu0 0.0
    %71 = vmatprep.subr.mxu0 0.0
    %72 = vmatpush1.xpose.msra.mxu0 0.0
    %73 = vmatprep.subr.mxu0 0.0
    %74 = vmatpush1.xpose.msra.mxu0 0.0
    %75 = vmatprep.subr.mxu0 0.0
    %76 = vmatpush1.xpose.msra.mxu0 0.0
    %77 = vmatprep.subr.mxu0 0.0
    %78 = vmatpush1.xpose.msra.mxu0 0.0
    %79 = vmatprep.subr.mxu0 0.0
    %80 = vmatpush1.xpose.msra.mxu0 0.0
    %81 = vmatprep.subr.mxu0 0.0
    %82 = vmatpush1.xpose.msra.mxu0 0.0
    %83 = vmatprep.subr.mxu0 0.0
    %84 = vmatpush1.xpose.msra.mxu0 0.0
    %85 = vmatprep.subr.mxu0 0.0
    %86 = vmatpush1.xpose.msra.mxu0 0.0
    %87 = vmatprep.subr.mxu0 0.0
    %88 = vmatpush1.xpose.msra.mxu0 0.0
    %89 = vmatprep.subr.mxu0 0.0
    %90 = vmatpush1.xpose.msra.mxu0 0.0
    %91 = vmatprep.subr.mxu0 0.0
    %92 = vmatpush1.xpose.msra.mxu0 0.0
    %93 = vmatprep.subr.mxu0 0.0
    %94 = vmatpush1.xpose.msra.mxu0 0.0
    %95 = vmatprep.subr.mxu0 0.0
    %96 = vmatpush1.xpose.msra.mxu0 0.0
    %97 = vmatprep.subr.mxu0 0.0
    %98 = vmatpush1.xpose.msra.mxu0 0.0
    %99 = vmatprep.subr.mxu0 0.0
    %100 = vmatpush1.xpose.msra.mxu0 0.0
    %101 = vmatprep.subr.mxu0 0.0
    %102 = vmatpush1.xpose.msra.mxu0 0.0
    %103 = vmatprep.subr.mxu0 0.0
    %104 = vmatpush1.xpose.msra.mxu0 0.0
    %105 = vmatprep.subr.mxu0 0.0
    %106 = vmatpush1.xpose.msra.mxu0 0.0
    %107 = vmatprep.subr.mxu0 0.0
    %108 = vmatpush1.xpose.msra.mxu0 0.0
    %109 = vmatprep.subr.mxu0 0.0
    %110 = vmatpush1.xpose.msra.mxu0 0.0
    %111 = vmatprep.subr.mxu0 0.0
    %112 = vmatpush1.xpose.msra.mxu0 0.0
    %113 = vmatprep.subr.mxu0 0.0
    %114 = vmatpush1.xpose.msra.mxu0 0.0
    %115 = vmatprep.subr.mxu0 0.0
    %116 = vmatpush1.xpose.msra.mxu0 0.0
    %117 = vmatprep.subr.mxu0 0.0
    %118 = vmatpush1.xpose.msra.mxu0 0.0
    %119 = vmatprep.subr.mxu0 0.0
    %120 = vmatpush1.xpose.msra.mxu0 0.0
    %121 = vmatprep.mubr.f32.mxu0 0.0
    %122 = vmatmul.mubr.f32.gmra.mrb[0].mxu0 %v52
    %v123 = vpop.f32.mrb[0].mxu0
    %v124 = vadd.f32 0.0, %v123
    %v125 = vpop.f32.mrb[0].mxu0
    %126 = vdwg.mxu0
    %v127 = vmax.f32 %v124, 0.0
    %v128 = vand.u32 2147483647, %v124
    %v129 = vsub.f32 0.0, %v128
    %v130 = vmul.f32 %v129, 1.442695
    %v131 = vpow.pop %v130
    %v132 = vadd.f32 %v131, 1.0
    %v133 = vlog2.pop %v132
    %v134 = vmul.f32 %v133, 0.6931472
    %v135 = vmul.f32 -0.5, %v131
    %v136 = vadd.f32 %v135, 1.0
    %v137 = vmul.f32 %v136, %v131
    %v138 = vand.u32 2147483647, %v131
    %vm139 = vcmp.lt.f32.partialorder %v138, 0.0004427343
    %v140 = vsel %vm139, %v137, %v134
    %v141 = vadd.f32 %v127, %v140
    %v142 = vld [vmem:[#allocation2] sm:$0x1]
    %vm143 = vcmask 64512
    %v144 = vsel %vm143, %v141, 0.0
    %145 = vadd.xlane.f32.xlu0 %v144
    %v146 = vpop.xlane.xlu0 %145
    %v147 = vrot.slane %v146, 4
    %v148 = vadd.f32 %v146, %v147
    %v149 = vrot.slane %v148, 2
    %v150 = vadd.f32 %v148, %v149
    %v151 = vrot.slane %v150, 1
    %v152 = vadd.f32 %v150, %v151
    %s153 = vtos %v152
    %s154 = smul.f32 %s153, 0.14285715
    %v155 = vstv %s154
    %v156 = vadd.f32 %v142, %v155
    %vm157 = vcmask 0
    %158 = vst.msk [vmem:[#allocation2] sm:$0x1] %vm157, %v156
    %p159 = scmp.eq.s32.totalorder 0, 0
    // Predicated region
    $region22: #{tpu_custom_call.1} parent=1 // pred_check
      %p160 = pneg %p159
    $region23: #{tpu_custom_call.1} parent=1 // pred_check_branch
      %162 = sbr.rel (%p160) target = $region25
    $region24: #{tpu_custom_call.1} parent=1 // pred_region
      %v163 = vlaneseq
      %v164 = vshrl.u32 %v163, 7
      %v165 = vlaneseq
      %v166 = vand.u32 %v165, 127
      %vm167 = vcmp.eq.s32.totalorder %v164, %v166
      %v168 = vmul.f32 %v141, 0.85714287
      %v169 = vsub.f32 %v168, %v124
      %v170 = vsel %vm167, %v169, 0.0
      %v171 = vld [vmem:[#allocation2] sm:$0x1]
      %v172 = vsel %vm143, %v170, 0.0
      %173 = vadd.xlane.f32.xlu0 %v172
      %v174 = vpop.xlane.xlu0 %173
      %v175 = vrot.slane %v174, 4
      %v176 = vadd.f32 %v174, %v175
      %v177 = vrot.slane %v176, 2
      %v178 = vadd.f32 %v176, %v177
      %v179 = vrot.slane %v178, 1
      %v180 = vadd.f32 %v178, %v179
      %s181 = vtos %v180
      %v182 = vstv %s181
      %v183 = vadd.f32 %v171, %v182
      %184 = vst.msk [vmem:[#allocation2] sm:$0x1] %vm157, %v183
    $region25: #{tpu_custom_call.1} parent=1 // pred_fallthru
      _
    // Predicated region
    $region26: #{tpu_custom_call.1} parent=1 // pred_check
      %p185 = pneg %p40
    $region27: #{tpu_custom_call.1} parent=1 // pred_check_branch
      %187 = sbr.rel (%p185) target = $region29
    $region28: #{tpu_custom_call.1} parent=1 // pred_region
      %v188 = vld [vmem:[#allocation3] sm:$0x1]
      %v189 = vmul.f32 %v48, %v48
      %v190 = vsel %vm50, %v189, 0.0
      %191 = vadd.xlane.f32.xlu0 %v190
      %v192 = vpop.xlane.xlu0 %191
      %v193 = vrot.slane %v192, 4
      %v194 = vadd.f32 %v192, %v193
      %v195 = vrot.slane %v194, 2
      %v196 = vadd.f32 %v194, %v195
      %v197 = vrot.slane %v196, 1
      %v198 = vadd.f32 %v196, %v197
      %s199 = vtos %v198
      %v200 = vstv %s199
      %v201 = vadd.f32 %v188, %v200
      %202 = vst.msk [vmem:[#allocation3] sm:$0x1] %vm157, %v201
    $region29: #{tpu_custom_call.1} parent=1 // pred_fallthru
      _
    // Predicated region
    $region30: #{tpu_custom_call.1} parent=1 // pred_check
      %p203 = pneg %p39
    $region31: #{tpu_custom_call.1} parent=1 // pred_check_branch
      %205 = sbr.rel (%p203) target = $region33
    $region32: #{tpu_custom_call.1} parent=1 // pred_region
      %v206 = vld [vmem:[#allocation3] sm:$0x1]
      %v207 = vmul.f32 %v49, %v49
      %v208 = vsel %vm50, %v207, 0.0
      %209 = vadd.xlane.f32.xlu0 %v208
      %v210 = vpop.xlane.xlu0 %209
      %v211 = vrot.slane %v210, 4
      %v212 = vadd.f32 %v210, %v211
      %v213 = vrot.slane %v212, 2
      %v214 = vadd.f32 %v212, %v213
      %v215 = vrot.slane %v214, 1
      %v216 = vadd.f32 %v214, %v215
      %s217 = vtos %v216
      %v218 = vstv %s217
      %v219 = vadd.f32 %v206, %v218
      %220 = vst.msk [vmem:[#allocation3] sm:$0x1] %vm157, %v219
    $region33: #{tpu_custom_call.1} parent=1 // pred_fallthru
      _
    // Predicated region
    $region34: #{tpu_custom_call.1} parent=1 // pred_check
      _
    $region35: #{tpu_custom_call.1} parent=1 // pred_check_branch
      %222 = sbr.rel (%p41) target = $region37
    $region36: #{tpu_custom_call.1} parent=1 // pred_region
      %v223 = vld [vmem:[#allocation2] sm:$0x1]
      %v224 = vmul.f32 %v223, 0.0625
      %225 = vst.msk [vmem:[#allocation9] sm:$0x1] %vm157, %v224
      %v226 = vld [vmem:[#allocation3] sm:$0x1]
      %v227 = vmul.f32 %v226, 3.90625e-05
      %228 = vst.msk [vmem:[#allocation10] sm:$0x1] %vm157, %v227
    $region37: #{tpu_custom_call.1} parent=1 // pred_fallthru
      _
    // Predicated region
    $region38: #{tpu_custom_call.1} parent=1 // pred_check
      _
    $region39: #{tpu_custom_call.1} parent=1 // pred_check_branch
      %230 = sbr.rel (0) target = $region41
    $region40: #{tpu_custom_call.1} parent=1 // pred_region
      %s232 = ssub.s32 16, 16
      %233 = vsyncadd [#allocation6], %s232
      %s235 = sshll.u32 [#allocation9], 4
      %s236 = int_to_ptr.vmem [resolvable:$true] %s235
      %238 = dma.vmem_to_hbm [thread:$0]  %s236, 16, %s2, [#allocation6]
    $region41: #{tpu_custom_call.1} parent=1 // pred_fallthru
      _
    // Predicated region
    $region42: #{tpu_custom_call.1} parent=1 // pred_check
      _
    $region43: #{tpu_custom_call.1} parent=1 // pred_check_branch
      %240 = sbr.rel (0) target = $region45
    $region44: #{tpu_custom_call.1} parent=1 // pred_region
      %s242 = ssub.s32 16, 16
      %243 = vsyncadd [#allocation11], %s242
      %s245 = sshll.u32 [#allocation10], 4
      %s246 = int_to_ptr.vmem [resolvable:$true] %s245
      %248 = dma.vmem_to_hbm [thread:$0]  %s246, 16, %s3, [#allocation11]
    $region45: #{tpu_custom_call.1} parent=1 // pred_fallthru
      _
    // Predicated region
    $region46: #{tpu_custom_call.1} parent=1 // pred_check
      _
    $region47: #{tpu_custom_call.1} parent=1 // pred_check_branch
      %250 = sbr.rel (0) target = $region49
    $region48: #{tpu_custom_call.1} parent=1 // pred_region
      %251 = dma.done [#allocation6], 16
    $region49: #{tpu_custom_call.1} parent=1 // pred_fallthru
      _
    // Predicated region
    $region50: #{tpu_custom_call.1} parent=1 // pred_check
      _
    $region51: #{tpu_custom_call.1} parent=1 // pred_check_branch
      %253 = sbr.rel (0) target = $region53
    $region52: #{tpu_custom_call.1} parent=1 // pred_region
      %254 = dma.done [#allocation11], 16
    $region53: #{tpu_custom_call.1} parent=1 // pred_fallthru
      _
    %255 = vsyncpa [#allocation5], 1
    %256 = vsyncpa [#allocation8], 1
    %257 = vsyncpa [#allocation6], 1
    %258 = vsyncpa [#allocation11], 1

</llo_original>
